<compile_context>
chip_gen: v6e
topology: v6e:2x2x1
jax: 0.10.0
libtpu: 0.0.40
codegen_flags: <defaults>
</compile_context>

<pallas_src>
import functools

import jax
import jax.numpy as jnp
from jax.experimental import pallas as pl
from jax.experimental.pallas import tpu as pltpu


_SQRT_HALF = 0.7071067811865476
_GELU_TANH_C = 0.7978845608028654  # sqrt(2/pi)
_LN_EPS = 1e-5


def _gelu(x, approximate):
    if approximate:
        # tanh-based approximation: tanh runs on the EUP (separate VLIW slot),
        # avoiding the long erf VALU polynomial. Deviates ~1e-3 from exact GELU.
        inner = _GELU_TANH_C * (x + 0.044715 * x * x * x)
        return 0.5 * x * (1.0 + jnp.tanh(inner))
    # PyTorch nn.GELU() default: exact erf-based GELU.
    return 0.5 * x * (1.0 + jax.lax.erf(x * _SQRT_HALF))


def _mlp_head_kernel(x_ref, w1_ref, m1_ref, w2_ref, m2_ref, w3_ref,
                     vecs_ref, b3_ref, o_ref, *, approximate_gelu):
    """One (TMP, G*input_dim) packed row tile -> (TMP, GP) per-row outputs.

    Weights are block-diagonal over G lane groups; the LayerNorm mean is folded
    into w1/w2 (the MXU emits centered pre-activations) and the per-group
    variance is computed with a block-diagonal ones/h matmul (MXU, not XLU).
    """
    h2g = w2_ref.shape[1]  # G * hidden2 (static)

    # Packed per-feature vectors, one resident (8, G*hidden) tile.
    b1c = vecs_ref[0:1, :]
    g1 = vecs_ref[1:2, :]
    be1 = vecs_ref[2:3, :]
    b2c = vecs_ref[3:4, :h2g]
    g2 = vecs_ref[4:5, :h2g]
    be2 = vecs_ref[5:6, :h2g]

    # x lands in VMEM in its HBM dtype; cast to the matmul dtype in-register.
    x = x_ref[...].astype(w1_ref.dtype)

    # --- Linear 1 (+LN mean already folded in) -> variance -> scale -> GELU ---
    c = jnp.dot(x, w1_ref[...], preferred_element_type=jnp.float32) + b1c
    var = jnp.dot(c * c, m1_ref[...], preferred_element_type=jnp.float32)
    h = c * jax.lax.rsqrt(var + _LN_EPS) * g1 + be1
    h = _gelu(h, approximate_gelu)
    # Dropout(0.3): identity at eval.

    # --- Linear 2 (+LN mean folded) -> variance -> scale -> GELU ---
    c = jnp.dot(h.astype(w2_ref.dtype), w2_ref[...],
                preferred_element_type=jnp.float32) + b2c
    var = jnp.dot(c * c, m2_ref[...], preferred_element_type=jnp.float32)
    h = c * jax.lax.rsqrt(var + _LN_EPS) * g2 + be2
    h = _gelu(h, approximate_gelu)
    # Dropout(0.3): identity at eval.

    # --- Linear 3: hidden2 -> 1 per original row (block-diag w3 columns). ---
    out = jnp.dot(h, w3_ref[...], preferred_element_type=jnp.float32) + b3_ref[0]
    o_ref[...] = out.astype(o_ref.dtype)


def _round_up(a, b):
    return (a + b - 1) // b * b


def _vmem_caps():
    """Generation-aware (tile_budget, vmem_limit_cap) in bytes."""
    try:
        cap = int(pltpu.get_tpu_info().vmem_capacity_bytes)
    except Exception:
        cap = 64 << 20  # conservative fallback: v7x per-TensorCore VMEM
    tile_budget = (cap * 3) // 8   # 24 MiB @ 64 MiB (v7x), 48 MiB @ 128 MiB (v5e/v6e)
    limit_cap = (cap * 3) // 4     # leave headroom for Mosaic internal scratch
    return tile_budget, limit_cap


def _pick_block_rows(n_packed, gin, hg, h2g, x_itemsize, max_packed_rows, budget):
    """Largest packed-row tile (multiple of 8) fitting the VMEM budget."""

    def footprint(t):
        x_bytes = 2 * t * max(gin, 128) * x_itemsize                # double-buffered x
        act_bytes = t * (6 * max(hg, 128) + 4 * max(h2g, 128)) * 4  # f32 intermediates
        out_bytes = 2 * t * 128 * 4                                 # double-buffered out
        return x_bytes + act_bytes + out_bytes

    total = _round_up(max(n_packed, 1), 8)
    cap = min(total, _round_up(max(max_packed_rows, 8), 8))
    # Keep at least two grid steps for large inputs so the "parallel" row axis can
    # shard across both TensorCores on v7x (one extra ~0.35us step is free on 1-TC chips).
    if total >= 1024:
        cap = min(cap, _round_up((total + 1) // 2, 8))
    if cap <= 256:
        return cap
    tmp = 256
    while tmp * 2 <= cap and footprint(tmp * 2) <= budget:
        tmp *= 2
    return tmp


def _vmem_padded_bytes(a):
    s = a.shape
    return _round_up(s[-2], 8) * _round_up(s[-1], 128) * a.dtype.itemsize


def improved_bottom_head_forward(x, params, *, max_block_rows=8192,
                                 matmul_dtype=None, approximate_gelu=False,
                                 pack_lanes=True, out_dtype=jnp.float32):
    """x: (..., input_dim). Returns (..., 1) in `out_dtype` (eval-mode module)."""
    (w1, b1, g1, be1, w2, b2, g2, be2, w3, b3) = params
    input_dim = int(x.shape[-1])
    hidden = int(w1.shape[1])
    hidden2 = int(w2.shape[1])
    lead_shape = x.shape[:-1]
    n_rows = 1
    for d in lead_shape:
        n_rows *= int(d)

    # Lane-packing factor: pack G original rows per vreg row when features are
    # narrow (32/32/16 -> G=4) so VPU/EUP/LN work runs on full 128-lane vregs.
    G = max(1, 128 // max(input_dim, hidden)) if pack_lanes else 1
    gin, HG, H2G = G * input_dim, G * hidden, G * hidden2
    GP = max(G, 8)  # padded output-column count (avoids a 1-lane matmul at G=1)

    f32 = jnp.float32
    mm_dtype = jnp.dtype(matmul_dtype) if matmul_dtype is not None else f32

    # ---------- parameter prep (tiny; block-diag + LN-mean folding) ----------
    eye_g = jnp.eye(G, dtype=f32)
    c1 = jnp.eye(hidden, dtype=f32) - jnp.full((hidden, hidden), 1.0 / hidden, f32)
    c2 = jnp.eye(hidden2, dtype=f32) - jnp.full((hidden2, hidden2), 1.0 / hidden2, f32)
    w1c = w1.astype(f32) @ c1                              # LN1 mean folded into weights
    b1c = b1.reshape(1, hidden).astype(f32) @ c1
    w2c = w2.astype(f32) @ c2                              # LN2 mean folded into weights
    b2c = b2.reshape(1, hidden2).astype(f32) @ c2

    W1 = jnp.kron(eye_g, w1c).astype(mm_dtype)                                  # (G*in, HG)
    M1 = jnp.kron(eye_g, jnp.full((hidden, hidden), 1.0 / hidden, f32))         # (HG, HG)
    W2 = jnp.kron(eye_g, w2c).astype(mm_dtype)                                  # (HG, H2G)
    M2 = jnp.kron(eye_g, jnp.full((hidden2, hidden2), 1.0 / hidden2, f32))      # (H2G, H2G)
    W3 = jnp.kron(eye_g, w3.reshape(hidden2, 1).astype(f32))                    # (H2G, G)
    W3 = jnp.pad(W3, ((0, 0), (0, GP - G)))                                     # (H2G, GP)

    def tile_pad(v, width):
        v = jnp.tile(jnp.asarray(v, f32).reshape(1, -1), (1, G))
        return jnp.pad(v, ((0, 0), (0, width - v.shape[1])))

    # All seven tiny per-feature vectors in one resident (8, HG) tile.
    vecs = jnp.concatenate(
        [tile_pad(b1c, HG), tile_pad(g1, HG), tile_pad(be1, HG),
         tile_pad(b2c, HG), tile_pad(g2, HG), tile_pad(be2, HG),
         jnp.zeros((2, HG), f32)], axis=0)                                      # (8, HG)
    b3_s = b3.reshape(1).astype(f32)

    # ---------- x packing & tiling ----------
    x2d = x.reshape(n_rows, input_dim)
    if matmul_dtype is not None:
        x2d = x2d.astype(mm_dtype)   # halves x DMA / VMEM when bf16 (v6e/v7x)

    tile_budget, limit_cap = _vmem_caps()
    n_packed = -(-n_rows // G)
    max_packed_rows = max(1, max_block_rows // G)
    tmp = _pick_block_rows(n_packed, gin, HG, H2G, x2d.dtype.itemsize,
                           max_packed_rows, tile_budget)
    n_packed_pad = _round_up(max(n_packed, 1), tmp)
    n_pad = n_packed_pad * G
    grid = n_packed_pad // tmp
    if n_pad != n_rows:
        # Zero-padded tail rows flow through harmlessly and are sliced off below.
        x2d = jnp.pad(x2d, ((0, n_pad - n_rows), (0, 0)))
    x_packed = x2d.reshape(n_packed_pad, gin)   # row r = original rows r*G .. r*G+G-1

    # Accurate VMEM working-set estimate (no double-counted double-buffering).
    x_bytes = 2 * tmp * max(gin, 128) * x_packed.dtype.itemsize
    act_bytes = tmp * (6 * max(HG, 128) + 4 * max(H2G, 128)) * 4
    out_bytes = 2 * tmp * 128 * 4
    w_bytes = 2 * sum(_vmem_padded_bytes(a) for a in (W1, M1, W2, M2, W3, vecs))
    vmem_limit = int(min(limit_cap,
                         max(16 << 20,
                             x_bytes + act_bytes + out_bytes + w_bytes + (6 << 20))))

    def const_spec(shape):
        # Resident across all grid steps (constant block index).
        return pl.BlockSpec(shape, lambda i, _s=shape: tuple(0 for _ in _s))

    out2d = pl.pallas_call(
        functools.partial(_mlp_head_kernel, approximate_gelu=approximate_gelu),
        out_shape=jax.ShapeDtypeStruct((n_packed_pad, GP), jnp.dtype(out_dtype)),
        grid_spec=pltpu.PrefetchScalarGridSpec(
            num_scalar_prefetch=0,
            grid=(grid,),
            in_specs=[
                pl.BlockSpec((tmp, gin), lambda i: (i, 0)),          # packed x rows
                const_spec((gin, HG)),                               # W1 (block-diag, centered)
                const_spec((HG, HG)),                                # M1 (var mean matrix)
                const_spec((HG, H2G)),                               # W2 (block-diag, centered)
                const_spec((H2G, H2G)),                              # M2 (var mean matrix)
                const_spec((H2G, GP)),                               # W3 (block-diag columns)
                const_spec((8, HG)),                                 # packed bias/gamma/beta
                pl.BlockSpec(memory_space=pltpu.MemorySpace.SMEM),   # b3 scalar
            ],
            out_specs=pl.BlockSpec((tmp, GP), lambda i: (i, 0)),
        ),
        compiler_params=pltpu.CompilerParams(
            dimension_semantics=("parallel",),
            vmem_limit_bytes=vmem_limit,
        ),
    )(x_packed, W1, M1, W2, M2, W3, vecs, b3_s)

    out = out2d[:, :G].reshape(n_pad)[:n_rows]
    return out.reshape(*lead_shape, 1)


def init_params(key, input_dim, hidden_dim):
    """Deterministic synthetic parameters with the same shapes as the PyTorch module."""
    h2 = hidden_dim // 2
    keys = jax.random.split(key, 3)

    def lin(k, fan_in, fan_out):
        # Uniform(-1/sqrt(fan_in), 1/sqrt(fan_in)) like PyTorch's default Linear init.
        bound = 1.0 / jnp.sqrt(jnp.float32(fan_in))
        kw, kb = jax.random.split(k)
        w = jax.random.uniform(kw, (fan_in, fan_out), jnp.float32, -bound, bound)
        b = jax.random.uniform(kb, (1, fan_out), jnp.float32, -bound, bound)
        return w, b

    w1, b1 = lin(keys[0], input_dim, hidden_dim)
    w2, b2 = lin(keys[1], hidden_dim, h2)
    w3, b3 = lin(keys[2], h2, 1)
    g1 = jnp.ones((1, hidden_dim), jnp.float32)
    be1 = jnp.zeros((1, hidden_dim), jnp.float32)
    g2 = jnp.ones((1, h2), jnp.float32)
    be2 = jnp.zeros((1, h2), jnp.float32)
    return (w1, b1, g1, be1, w2, b2, g2, be2, w3, b3)


def reference_forward(x, params):
    """Pure-JAX reference matching the PyTorch module (eval mode)."""
    (w1, b1, g1, be1, w2, b2, g2, be2, w3, b3) = params

    def ln(v, g, b):
        m = jnp.mean(v, axis=-1, keepdims=True)
        c = v - m
        var = jnp.mean(c * c, axis=-1, keepdims=True)
        return c * jax.lax.rsqrt(var + _LN_EPS) * g + b

    h = x @ w1 + b1
    h = _gelu(ln(h, g1, be1), approximate=False)
    h = h @ w2 + b2
    h = _gelu(ln(h, g2, be2), approximate=False)
    return h @ w3 + b3


if __name__ == "__main__":
    key = jax.random.PRNGKey(0)
    k_x, k_p, k_x2 = jax.random.split(key, 3)

    # Small shapes consistent with the module: (batch, seq, input_dim) -> (batch, seq, 1)
    batch, seq, input_dim, hidden_dim = 2, 8, 32, 32
    x = jax.random.normal(k_x, (batch, seq, input_dim), dtype=jnp.float32)
    params = init_params(k_p, input_dim, hidden_dim)
    ref = reference_forward(x.reshape(-1, input_dim), params).reshape(batch, seq, 1)

    # 1) f32 lane-packed path (exact module semantics, G=4).
    out = jax.block_until_ready(improved_bottom_head_forward(x, params))
    assert out.shape == (batch, seq, 1), out.shape
    assert out.dtype == jnp.float32
    assert jnp.allclose(out, ref, atol=1e-4, rtol=1e-4), float(jnp.max(jnp.abs(out - ref)))

    # 2) Multi-tile grid + row count not a multiple of the tile (tail padding/slicing,
    #    exercises zero-padded rows flowing through LN).
    x2 = jax.random.normal(k_x2, (3, 100, input_dim), dtype=jnp.float32)
    ref2 = reference_forward(x2.reshape(-1, input_dim), params).reshape(3, 100, 1)
    out2 = jax.block_until_ready(
        improved_bottom_head_forward(x2, params, max_block_rows=128))
    assert out2.shape == (3, 100, 1), out2.shape
    assert jnp.allclose(out2, ref2, atol=1e-4, rtol=1e-4), float(jnp.max(jnp.abs(out2 - ref2)))

    # 3) Unpacked fallback (G=1) -- same semantics, path used for wide feature dims.
    out3 = jax.block_until_ready(
        improved_bottom_head_forward(x, params, pack_lanes=False))
    assert jnp.allclose(out3, ref, atol=1e-4, rtol=1e-4), float(jnp.max(jnp.abs(out3 - ref)))

    # 4) bf16 MXU-operand path (recommended on v6e/v7x); elementwise math stays f32,
    #    output stays f32.  Tolerance tightened vs. previous 0.15.
    out_bf16 = jax.block_until_ready(
        improved_bottom_head_forward(x, params, matmul_dtype=jnp.bfloat16))
    assert out_bf16.dtype == jnp.float32
    assert jnp.allclose(out_bf16, ref, atol=5e-2, rtol=5e-2), (
        float(jnp.max(jnp.abs(out_bf16 - ref))))

    # 5) Opt-in tanh-approximate GELU (EUP path); small deviation from exact GELU.
    out_tanh = jax.block_until_ready(
        improved_bottom_head_forward(x, params, approximate_gelu=True))
    assert jnp.allclose(out_tanh, ref, atol=5e-2, rtol=5e-2), (
        float(jnp.max(jnp.abs(out_tanh - ref))))

    print("KERNEL_OK")
</pallas_src>

<mosaic_0001>
module attributes {stable_mosaic.version = 11 : i64} {
  func.func @_mlp_head_kernel(%arg0: i32, %arg1: memref<8x128xf32, #tpu.memory_space<vmem>>, %arg2: memref<128x128xf32, #tpu.memory_space<vmem>>, %arg3: memref<128x128xf32, #tpu.memory_space<vmem>>, %arg4: memref<128x64xf32, #tpu.memory_space<vmem>>, %arg5: memref<64x64xf32, #tpu.memory_space<vmem>>, %arg6: memref<64x8xf32, #tpu.memory_space<vmem>>, %arg7: memref<8x128xf32, #tpu.memory_space<vmem>>, %arg8: memref<1xf32, #tpu.memory_space<smem>>, %arg9: memref<8x8xf32, #tpu.memory_space<vmem>>) attributes {dimension_semantics = [#tpu.dimension_semantics<parallel>], iteration_bounds = array<i64: 1>, scalar_prefetch = 0 : i64, scratch_operands = 0 : i64, tpu.core_type = #tpu.core_type<tc>, window_params = [{transform_indices = @transform_0, window_bounds = array<i64: 8, 128>}, {pipeline_mode = #tpu.pipeline_mode<synchronous>, transform_indices = @transform_1, window_bounds = array<i64: 128, 128>}, {pipeline_mode = #tpu.pipeline_mode<synchronous>, transform_indices = @transform_2, window_bounds = array<i64: 128, 128>}, {pipeline_mode = #tpu.pipeline_mode<synchronous>, transform_indices = @transform_3, window_bounds = array<i64: 128, 64>}, {pipeline_mode = #tpu.pipeline_mode<synchronous>, transform_indices = @transform_4, window_bounds = array<i64: 64, 64>}, {pipeline_mode = #tpu.pipeline_mode<synchronous>, transform_indices = @transform_5, window_bounds = array<i64: 64, 8>}, {pipeline_mode = #tpu.pipeline_mode<synchronous>, transform_indices = @transform_6, window_bounds = array<i64: 8, 128>}, {transform_indices = @transform_7, window_bounds = array<i64: 1>}, {transform_indices = @transform_8, window_bounds = array<i64: 8, 8>}]} {
    %c0 = arith.constant 0 : index
    %c0_0 = arith.constant 0 : index
    %0 = vector.load %arg7[%c0, %c0_0] : memref<8x128xf32, #tpu.memory_space<vmem>>, vector<1x128xf32>
    %c1 = arith.constant 1 : index
    %c0_1 = arith.constant 0 : index
    %1 = vector.load %arg7[%c1, %c0_1] : memref<8x128xf32, #tpu.memory_space<vmem>>, vector<1x128xf32>
    %c2 = arith.constant 2 : index
    %c0_2 = arith.constant 0 : index
    %2 = vector.load %arg7[%c2, %c0_2] : memref<8x128xf32, #tpu.memory_space<vmem>>, vector<1x128xf32>
    %c3 = arith.constant 3 : index
    %c0_3 = arith.constant 0 : index
    %3 = vector.load %arg7[%c3, %c0_3] : memref<8x128xf32, #tpu.memory_space<vmem>>, vector<1x64xf32>
    %c4 = arith.constant 4 : index
    %c0_4 = arith.constant 0 : index
    %4 = vector.load %arg7[%c4, %c0_4] : memref<8x128xf32, #tpu.memory_space<vmem>>, vector<1x64xf32>
    %c5 = arith.constant 5 : index
    %c0_5 = arith.constant 0 : index
    %5 = vector.load %arg7[%c5, %c0_5] : memref<8x128xf32, #tpu.memory_space<vmem>>, vector<1x64xf32>
    %c0_6 = arith.constant 0 : index
    %c0_7 = arith.constant 0 : index
    %6 = vector.load %arg1[%c0_6, %c0_7] : memref<8x128xf32, #tpu.memory_space<vmem>>, vector<8x128xf32>
    %c0_8 = arith.constant 0 : index
    %c0_9 = arith.constant 0 : index
    %7 = vector.load %arg2[%c0_8, %c0_9] : memref<128x128xf32, #tpu.memory_space<vmem>>, vector<128x128xf32>
    %cst = arith.constant dense<0.000000e+00> : vector<8x128xf32>
    %8 = tpu.matmul %6, %7, %cst {dimension_numbers = #tpu.dot_dimension_numbers<[1], [0], [0], [1], [0, 0, 1, 1], [], []>} : vector<8x128xf32>, vector<128x128xf32>, vector<8x128xf32> -> vector<8x128xf32>
    %9 = vector.broadcast %0 : vector<1x128xf32> to vector<8x128xf32>
    %10 = arith.addf %8, %9 : vector<8x128xf32>
    %11 = arith.mulf %10, %10 : vector<8x128xf32>
    %c0_10 = arith.constant 0 : index
    %c0_11 = arith.constant 0 : index
    %12 = vector.load %arg3[%c0_10, %c0_11] : memref<128x128xf32, #tpu.memory_space<vmem>>, vector<128x128xf32>
    %cst_12 = arith.constant dense<0.000000e+00> : vector<8x128xf32>
    %13 = tpu.matmul %11, %12, %cst_12 {dimension_numbers = #tpu.dot_dimension_numbers<[1], [0], [0], [1], [0, 0, 1, 1], [], []>} : vector<8x128xf32>, vector<128x128xf32>, vector<8x128xf32> -> vector<8x128xf32>
    %cst_13 = arith.constant 9.99999974E-6 : f32
    %14 = vector.broadcast %cst_13 : f32 to vector<8x128xf32>
    %15 = arith.addf %13, %14 : vector<8x128xf32>
    %16 = math.rsqrt %15 : vector<8x128xf32>
    %17 = arith.mulf %10, %16 : vector<8x128xf32>
    %18 = vector.broadcast %1 : vector<1x128xf32> to vector<8x128xf32>
    %19 = arith.mulf %17, %18 : vector<8x128xf32>
    %20 = vector.broadcast %2 : vector<1x128xf32> to vector<8x128xf32>
    %21 = arith.addf %19, %20 : vector<8x128xf32>
    %cst_14 = arith.constant 5.000000e-01 : f32
    %22 = vector.broadcast %cst_14 : f32 to vector<8x128xf32>
    %23 = arith.mulf %22, %21 : vector<8x128xf32>
    %cst_15 = arith.constant 0.707106769 : f32
    %24 = vector.broadcast %cst_15 : f32 to vector<8x128xf32>
    %25 = arith.mulf %21, %24 : vector<8x128xf32>
    %26 = math.erf %25 : vector<8x128xf32>
    %cst_16 = arith.constant 1.000000e+00 : f32
    %27 = vector.broadcast %cst_16 : f32 to vector<8x128xf32>
    %28 = arith.addf %27, %26 : vector<8x128xf32>
    %29 = arith.mulf %23, %28 : vector<8x128xf32>
    %c0_17 = arith.constant 0 : index
    %c0_18 = arith.constant 0 : index
    %30 = vector.load %arg4[%c0_17, %c0_18] : memref<128x64xf32, #tpu.memory_space<vmem>>, vector<128x64xf32>
    %cst_19 = arith.constant dense<0.000000e+00> : vector<8x64xf32>
    %31 = tpu.matmul %29, %30, %cst_19 {dimension_numbers = #tpu.dot_dimension_numbers<[1], [0], [0], [1], [0, 0, 1, 1], [], []>} : vector<8x128xf32>, vector<128x64xf32>, vector<8x64xf32> -> vector<8x64xf32>
    %32 = vector.broadcast %3 : vector<1x64xf32> to vector<8x64xf32>
    %33 = arith.addf %31, %32 : vector<8x64xf32>
    %34 = arith.mulf %33, %33 : vector<8x64xf32>
    %c0_20 = arith.constant 0 : index
    %c0_21 = arith.constant 0 : index
    %35 = vector.load %arg5[%c0_20, %c0_21] : memref<64x64xf32, #tpu.memory_space<vmem>>, vector<64x64xf32>
    %cst_22 = arith.constant dense<0.000000e+00> : vector<8x64xf32>
    %36 = tpu.matmul %34, %35, %cst_22 {dimension_numbers = #tpu.dot_dimension_numbers<[1], [0], [0], [1], [0, 0, 1, 1], [], []>} : vector<8x64xf32>, vector<64x64xf32>, vector<8x64xf32> -> vector<8x64xf32>
    %cst_23 = arith.constant 9.99999974E-6 : f32
    %37 = vector.broadcast %cst_23 : f32 to vector<8x64xf32>
    %38 = arith.addf %36, %37 : vector<8x64xf32>
    %39 = math.rsqrt %38 : vector<8x64xf32>
    %40 = arith.mulf %33, %39 : vector<8x64xf32>
    %41 = vector.broadcast %4 : vector<1x64xf32> to vector<8x64xf32>
    %42 = arith.mulf %40, %41 : vector<8x64xf32>
    %43 = vector.broadcast %5 : vector<1x64xf32> to vector<8x64xf32>
    %44 = arith.addf %42, %43 : vector<8x64xf32>
    %cst_24 = arith.constant 5.000000e-01 : f32
    %45 = vector.broadcast %cst_24 : f32 to vector<8x64xf32>
    %46 = arith.mulf %45, %44 : vector<8x64xf32>
    %cst_25 = arith.constant 0.707106769 : f32
    %47 = vector.broadcast %cst_25 : f32 to vector<8x64xf32>
    %48 = arith.mulf %44, %47 : vector<8x64xf32>
    %49 = math.erf %48 : vector<8x64xf32>
    %cst_26 = arith.constant 1.000000e+00 : f32
    %50 = vector.broadcast %cst_26 : f32 to vector<8x64xf32>
    %51 = arith.addf %50, %49 : vector<8x64xf32>
    %52 = arith.mulf %46, %51 : vector<8x64xf32>
    %c0_27 = arith.constant 0 : index
    %c0_28 = arith.constant 0 : index
    %53 = vector.load %arg6[%c0_27, %c0_28] : memref<64x8xf32, #tpu.memory_space<vmem>>, vector<64x8xf32>
    %cst_29 = arith.constant dense<0.000000e+00> : vector<8x8xf32>
    %54 = tpu.matmul %52, %53, %cst_29 {dimension_numbers = #tpu.dot_dimension_numbers<[1], [0], [0], [1], [0, 0, 1, 1], [], []>} : vector<8x64xf32>, vector<64x8xf32>, vector<8x8xf32> -> vector<8x8xf32>
    %c0_30 = arith.constant 0 : index
    %55 = memref.load %arg8[%c0_30] : memref<1xf32, #tpu.memory_space<smem>>
    %56 = vector.broadcast %55 : f32 to vector<8x8xf32>
    %57 = arith.addf %54, %56 : vector<8x8xf32>
    %c0_31 = arith.constant 0 : index
    %c0_32 = arith.constant 0 : index
    %58 = vector.load %arg9[%c0_31, %c0_32] : memref<8x8xf32, #tpu.memory_space<vmem>>, vector<8x8xf32>
    tpu.vector_store %arg9[%c0_31, %c0_32], %57 {strides = array<i32>} : memref<8x8xf32, #tpu.memory_space<vmem>>, vector<8x8xf32>,
    return
  }
  func.func @transform_0(%arg0: i32) -> (i32, i32) {
    %c0_i32 = arith.constant 0 : i32
    %c0_i32_0 = arith.constant 0 : i32
    return %arg0, %c0_i32 : i32, i32
  }
  func.func @transform_1(%arg0: i32) -> (i32, i32) {
    %c0_i32 = arith.constant 0 : i32
    %c0_i32_0 = arith.constant 0 : i32
    %c0_i32_1 = arith.constant 0 : i32
    return %c0_i32, %c0_i32_0 : i32, i32
  }
  func.func @transform_2(%arg0: i32) -> (i32, i32) {
    %c0_i32 = arith.constant 0 : i32
    %c0_i32_0 = arith.constant 0 : i32
    %c0_i32_1 = arith.constant 0 : i32
    return %c0_i32, %c0_i32_0 : i32, i32
  }
  func.func @transform_3(%arg0: i32) -> (i32, i32) {
    %c0_i32 = arith.constant 0 : i32
    %c0_i32_0 = arith.constant 0 : i32
    %c0_i32_1 = arith.constant 0 : i32
    return %c0_i32, %c0_i32_0 : i32, i32
  }
  func.func @transform_4(%arg0: i32) -> (i32, i32) {
    %c0_i32 = arith.constant 0 : i32
    %c0_i32_0 = arith.constant 0 : i32
    %c0_i32_1 = arith.constant 0 : i32
    return %c0_i32, %c0_i32_0 : i32, i32
  }
  func.func @transform_5(%arg0: i32) -> (i32, i32) {
    %c0_i32 = arith.constant 0 : i32
    %c0_i32_0 = arith.constant 0 : i32
    %c0_i32_1 = arith.constant 0 : i32
    return %c0_i32, %c0_i32_0 : i32, i32
  }
  func.func @transform_6(%arg0: i32) -> (i32, i32) {
    %c0_i32 = arith.constant 0 : i32
    %c0_i32_0 = arith.constant 0 : i32
    %c0_i32_1 = arith.constant 0 : i32
    return %c0_i32, %c0_i32_0 : i32, i32
  }
  func.func @transform_7(%arg0: i32) -> i32 {
    %c0_i32 = arith.constant 0 : i32
    %c0_i32_0 = arith.constant 0 : i32
    return %c0_i32 : i32
  }
  func.func @transform_8(%arg0: i32) -> (i32, i32) {
    %c0_i32 = arith.constant 0 : i32
    %c0_i32_0 = arith.constant 0 : i32
    return %arg0, %c0_i32 : i32, i32
  }
}

</mosaic_0001>

<llo_original>
// kernel: tpu_custom_call.1
$region0: #{tpu_custom_call.1}
  #allocation0 [shape = 'u32[]', space=smem, size = 0x4, offset = 0x4, fixed_abs, tag = 'smem constant byte address 0x4 - core index']
  #allocation1 [shape = 'u32[144,128]{1,0:T(1,128)}', space=vmem, size = 0x12000, scoped, tag = 'internal scratch']
  #allocation2 [shape = 'f32[1]{0:T(128)S(6)}', space=smem, size = 0x200, scoped, tag = 'scoped memory for tpu_custom_call.1']
  %s0 = inlined_call_operand.vmem [shape: f32[8,128], index: 0, kind: input, shape index: {}]
  %s1 = inlined_call_operand.vmem [shape: f32[128,128], index: 1, kind: input, shape index: {}]
  %s2 = inlined_call_operand.vmem [shape: f32[128,128], index: 2, kind: input, shape index: {}]
  %s3 = inlined_call_operand.vmem [shape: f32[128,64], index: 3, kind: input, shape index: {}]
  %s4 = inlined_call_operand.hbm [shape: f32[64,64], index: 4, kind: input, shape index: {}]
  %s5 = inlined_call_operand.vmem [shape: f32[64,8], index: 5, kind: input, shape index: {}]
  %s6 = inlined_call_operand.hbm [shape: f32[8,128], index: 6, kind: input, shape index: {}]
  %s7 = inlined_call_operand.<no memory space> [shape: f32[1], index: 7, kind: input, shape index: {}]
  %s8 = inlined_call_operand.hbm [shape: f32[8,8], index: 8, kind: output, shape index: {}]
  %s9 = sld [smem:[#allocation0]]
  $region50: #{tpu_custom_call.1} parent=0
    _
  %s11 = ssub.s32 1, %s9
  %s12 = scalar_select 0, %s11, %s9
  %13 = sst [smem:[#allocation2]] %s7
  $region1: #{tpu_custom_call.1} parent=0
    #allocation3 [shape = 'u8[32768]{0}', space=vmem, size = 0x8000, scoped, tag = 'input window, operand 4, single buffered']
    #allocation4 [shape = 's32[1]{0}', space=sflag, size = 0x4, scoped, tag = 'scoped memory for tpu_custom_call.1']
    #allocation5 [shape = 's32[1]{0}', space=sflag, size = 0x4, scoped, tag = 'scoped memory for tpu_custom_call.1']
    #allocation6 [shape = 'u8[4096]{0}', space=vmem, size = 0x1000, scoped, tag = 'input window, operand 6, single buffered']
    #allocation7 [shape = 's32[1]{0}', space=sflag, size = 0x4, scoped, tag = 'scoped memory for tpu_custom_call.1']
    #allocation8 [shape = 'u8[4096]{0}', space=vmem, size = 0x1000, scoped, tag = 'output window, operand 0, single buffered']
    %14 = vsyncpa [#allocation4], 0
    %15 = vsyncpa [#allocation7], 0
    %16 = vsyncpa [#allocation5], 0
    // Predicated region
    $region2: #{tpu_custom_call.1} parent=1 // pred_check
      _
    $region3: #{tpu_custom_call.1} parent=1 // pred_check_branch
      %18 = sbr.rel (0) target = $region5
    $region4: #{tpu_custom_call.1} parent=1 // pred_region
      _
    $region5: #{tpu_custom_call.1} parent=1 // pred_fallthru
      _
    // Predicated region
    $region6: #{tpu_custom_call.1} parent=1 // pred_check
      _
    $region7: #{tpu_custom_call.1} parent=1 // pred_check_branch
      %20 = sbr.rel (0) target = $region9
    $region8: #{tpu_custom_call.1} parent=1 // pred_region
      _
    $region9: #{tpu_custom_call.1} parent=1 // pred_fallthru
      _
    // Predicated region
    $region10: #{tpu_custom_call.1} parent=1 // pred_check
      _
    $region11: #{tpu_custom_call.1} parent=1 // pred_check_branch
      %22 = sbr.rel (0) target = $region13
    $region12: #{tpu_custom_call.1} parent=1 // pred_region
      _
    $region13: #{tpu_custom_call.1} parent=1 // pred_fallthru
      _
    // Predicated region
    $region14: #{tpu_custom_call.1} parent=1 // pred_check
      _
    $region15: #{tpu_custom_call.1} parent=1 // pred_check_branch
      %24 = sbr.rel (0) target = $region17
    $region16: #{tpu_custom_call.1} parent=1 // pred_region
      _
    $region17: #{tpu_custom_call.1} parent=1 // pred_fallthru
      _
    // Predicated region
    $region18: #{tpu_custom_call.1} parent=1 // pred_check
      _
    $region19: #{tpu_custom_call.1} parent=1 // pred_check_branch
      %26 = sbr.rel (0) target = $region21
    $region20: #{tpu_custom_call.1} parent=1 // pred_region
      %s28 = ssub.s32 1024, 1024
      %29 = vsyncadd [#allocation4], %s28
      %s30 = sshll.u32 [#allocation3], 4
      %s31 = int_to_ptr.vmem [resolvable:$true] %s30
      %36 = dma.hbm_to_vmem [thread:$0]  %s4, 1024, %s31, [#allocation4], 128, 128, 8
    $region21: #{tpu_custom_call.1} parent=1 // pred_fallthru
      _
    // Predicated region
    $region22: #{tpu_custom_call.1} parent=1 // pred_check
      _
    $region23: #{tpu_custom_call.1} parent=1 // pred_check_branch
      %38 = sbr.rel (0) target = $region25
    $region24: #{tpu_custom_call.1} parent=1 // pred_region
      _
    $region25: #{tpu_custom_call.1} parent=1 // pred_fallthru
      _
    // Predicated region
    $region26: #{tpu_custom_call.1} parent=1 // pred_check
      _
    $region27: #{tpu_custom_call.1} parent=1 // pred_check_branch
      %40 = sbr.rel (0) target = $region29
    $region28: #{tpu_custom_call.1} parent=1 // pred_region
      %s42 = ssub.s32 128, 128
      %43 = vsyncadd [#allocation7], %s42
      %s45 = sshll.u32 [#allocation6], 4
      %s46 = int_to_ptr.vmem [resolvable:$true] %s45
      %48 = dma.hbm_to_vmem [thread:$0]  %s6, 128, %s46, [#allocation7]
    $region29: #{tpu_custom_call.1} parent=1 // pred_fallthru
      _
    // Predicated region
    $region30: #{tpu_custom_call.1} parent=1 // pred_check
      _
    $region31: #{tpu_custom_call.1} parent=1 // pred_check_branch
      %50 = sbr.rel (0) target = $region33
    $region32: #{tpu_custom_call.1} parent=1 // pred_region
      _
    $region33: #{tpu_custom_call.1} parent=1 // pred_fallthru
      _
    // Predicated region
    $region34: #{tpu_custom_call.1} parent=1 // pred_check
      _
    $region35: #{tpu_custom_call.1} parent=1 // pred_check_branch
      %52 = sbr.rel (0) target = $region37
    $region36: #{tpu_custom_call.1} parent=1 // pred_region
      %53 = dma.done [#allocation4], 1024
    $region37: #{tpu_custom_call.1} parent=1 // pred_fallthru
      _
    // Predicated region
    $region38: #{tpu_custom_call.1} parent=1 // pred_check
      _
    $region39: #{tpu_custom_call.1} parent=1 // pred_check_branch
      %55 = sbr.rel (0) target = $region41
    $region40: #{tpu_custom_call.1} parent=1 // pred_region
      %56 = dma.done [#allocation7], 128
    $region41: #{tpu_custom_call.1} parent=1 // pred_fallthru
      _
    %v57 = vld [vmem:[#allocation6] sm:$0x1]
    %v58 = vld [vmem:[#allocation6 + $0x1] sm:$0x1]
    %v59 = vld [vmem:[#allocation6 + $0x2] sm:$0x1]
    %v60 = vld [vmem:[#allocation6 + $0x3] sm:$0x1]
    %v61 = vld [vmem:[#allocation6 + $0x4] sm:$0x1]
    %v62 = vld [vmem:[#allocation6 + $0x5] sm:$0x1]
    %v63 = vld [vmem:[%s0] sm:$0xff]
    %v64 = vld [vmem:[%s1] sm:$0xff]
    %v65 = vld [vmem:[%s1 + $0x8] sm:$0xff]
    %v66 = vld [vmem:[%s1 + $0x10] sm:$0xff]
    %v67 = vld [vmem:[%s1 + $0x18] sm:$0xff]
    %v68 = vld [vmem:[%s1 + $0x20] sm:$0xff]
    %v69 = vld [vmem:[%s1 + $0x28] sm:$0xff]
    %v70 = vld [vmem:[%s1 + $0x30] sm:$0xff]
    %v71 = vld [vmem:[%s1 + $0x38] sm:$0xff]
    %v72 = vld [vmem:[%s1 + $0x40] sm:$0xff]
    %v73 = vld [vmem:[%s1 + $0x48] sm:$0xff]
    %v74 = vld [vmem:[%s1 + $0x50] sm:$0xff]
    %v75 = vld [vmem:[%s1 + $0x58] sm:$0xff]
    %v76 = vld [vmem:[%s1 + $0x60] sm:$0xff]
    %v77 = vld [vmem:[%s1 + $0x68] sm:$0xff]
    %v78 = vld [vmem:[%s1 + $0x70] sm:$0xff]
    %v79 = vld [vmem:[%s1 + $0x78] sm:$0xff]
    %v80 = vlaneseq
    %v81 = vshrl.u32 %v80, 7
    %v82 = vsub.s32 0, %v81
    %v83 = vrot.slane %v57, %v82
    %84 = vmatprep.subr.mxu0 0.0
    %85 = vmatpush1.msra.mxu0 %v79
    %86 = vmatprep.subr.mxu0 0.0
    %87 = vmatpush1.msra.mxu0 %v78
    %88 = vmatprep.subr.mxu0 0.0
    %89 = vmatpush1.msra.mxu0 %v77
    %90 = vmatprep.subr.mxu0 0.0
    %91 = vmatpush1.msra.mxu0 %v76
    %92 = vmatprep.subr.mxu0 0.0
    %93 = vmatpush1.msra.mxu0 %v75
    %94 = vmatprep.subr.mxu0 0.0
    %95 = vmatpush1.msra.mxu0 %v74
    %96 = vmatprep.subr.mxu0 0.0
    %97 = vmatpush1.msra.mxu0 %v73
    %98 = vmatprep.subr.mxu0 0.0
    %99 = vmatpush1.msra.mxu0 %v72
    %100 = vmatprep.subr.mxu0 0.0
    %101 = vmatpush1.msra.mxu0 %v71
    %102 = vmatprep.subr.mxu0 0.0
    %103 = vmatpush1.msra.mxu0 %v70
    %104 = vmatprep.subr.mxu0 0.0
    %105 = vmatpush1.msra.mxu0 %v69
    %106 = vmatprep.subr.mxu0 0.0
    %107 = vmatpush1.msra.mxu0 %v68
    %108 = vmatprep.subr.mxu0 0.0
    %109 = vmatpush1.msra.mxu0 %v67
    %110 = vmatprep.subr.mxu0 0.0
    %111 = vmatpush1.msra.mxu0 %v66
    %112 = vmatprep.subr.mxu0 0.0
    %113 = vmatpush1.msra.mxu0 %v65
    %114 = vmatprep.subr.mxu0 0.0
    %115 = vmatpush1.msra.mxu0 %v64
    %116 = vmatprep.subr.mxu0 0.0
    %117 = vmatpush2.msra.mxu0 0.0
    %118 = vmatprep.subr.mxu0 0.0
    %119 = vmatpush2.msra.mxu0 0.0
    %120 = vmatprep.subr.mxu0 0.0
    %121 = vmatpush2.msra.mxu0 0.0
    %122 = vmatprep.subr.mxu0 0.0
    %123 = vmatpush2.msra.mxu0 0.0
    %124 = vmatprep.subr.mxu0 0.0
    %125 = vmatpush2.msra.mxu0 0.0
    %126 = vmatprep.subr.mxu0 0.0
    %127 = vmatpush2.msra.mxu0 0.0
    %128 = vmatprep.subr.mxu0 0.0
    %129 = vmatpush2.msra.mxu0 0.0
    %130 = vmatprep.subr.mxu0 0.0
    %131 = vmatpush2.msra.mxu0 0.0
    %132 = vmatprep.subr.mxu0 0.0
    %133 = vmatpush2.msra.mxu0 0.0
    %134 = vmatprep.subr.mxu0 0.0
    %135 = vmatpush2.msra.mxu0 0.0
    %136 = vmatprep.subr.mxu0 0.0
    %137 = vmatpush2.msra.mxu0 0.0
    %138 = vmatprep.subr.mxu0 0.0
    %139 = vmatpush2.msra.mxu0 0.0
    %140 = vmatprep.subr.mxu0 0.0
    %141 = vmatpush2.msra.mxu0 0.0
    %142 = vmatprep.subr.mxu0 0.0
    %143 = vmatpush2.msra.mxu0 0.0
    %144 = vmatprep.subr.mxu0 0.0
    %145 = vmatpush2.msra.mxu0 0.0
    %146 = vmatprep.subr.mxu0 0.0
    %147 = vmatpush2.msra.mxu0 0.0
    %148 = vmatprep.mubr.f32.mxu0 0.0
    %149 = vmatmul.mubr.f32.gmra.mxu0 %v63
    %v150 = vpop.f32.mrf.mxu0
    %v151 = vadd.f32 %v83, %v150
    %v152 = vpop.f32.mrf.mxu0
    %153 = vdwg.mxu0
    %v154 = vmul.f32 %v151, %v151
    %v155 = vld [vmem:[%s2] sm:$0xff]
    %v156 = vld [vmem:[%s2 + $0x8] sm:$0xff]
    %v157 = vld [vmem:[%s2 + $0x10] sm:$0xff]
    %v158 = vld [vmem:[%s2 + $0x18] sm:$0xff]
    %v159 = vld [vmem:[%s2 + $0x20] sm:$0xff]
    %v160 = vld [vmem:[%s2 + $0x28] sm:$0xff]
    %v161 = vld [vmem:[%s2 + $0x30] sm:$0xff]
    %v162 = vld [vmem:[%s2 + $0x38] sm:$0xff]
    %v163 = vld [vmem:[%s2 + $0x40] sm:$0xff]
    %v164 = vld [vmem:[%s2 + $0x48] sm:$0xff]
    %v165 = vld [vmem:[%s2 + $0x50] sm:$0xff]
    %v166 = vld [vmem:[%s2 + $0x58] sm:$0xff]
    %v167 = vld [vmem:[%s2 + $0x60] sm:$0xff]
    %v168 = vld [vmem:[%s2 + $0x68] sm:$0xff]
    %v169 = vld [vmem:[%s2 + $0x70] sm:$0xff]
    %v170 = vld [vmem:[%s2 + $0x78] sm:$0xff]
    %171 = vmatprep.subr.mxu0 0.0
    %172 = vmatpush1.msra.mxu0 %v170
    %173 = vmatprep.subr.mxu0 0.0
    %174 = vmatpush1.msra.mxu0 %v169
    %175 = vmatprep.subr.mxu0 0.0
    %176 = vmatpush1.msra.mxu0 %v168
    %177 = vmatprep.subr.mxu0 0.0
    %178 = vmatpush1.msra.mxu0 %v167
    %179 = vmatprep.subr.mxu0 0.0
    %180 = vmatpush1.msra.mxu0 %v166
    %181 = vmatprep.subr.mxu0 0.0
    %182 = vmatpush1.msra.mxu0 %v165
    %183 = vmatprep.subr.mxu0 0.0
    %184 = vmatpush1.msra.mxu0 %v164
    %185 = vmatprep.subr.mxu0 0.0
    %186 = vmatpush1.msra.mxu0 %v163
    %187 = vmatprep.subr.mxu0 0.0
    %188 = vmatpush1.msra.mxu0 %v162
    %189 = vmatprep.subr.mxu0 0.0
    %190 = vmatpush1.msra.mxu0 %v161
    %191 = vmatprep.subr.mxu0 0.0
    %192 = vmatpush1.msra.mxu0 %v160
    %193 = vmatprep.subr.mxu0 0.0
    %194 = vmatpush1.msra.mxu0 %v159
    %195 = vmatprep.subr.mxu0 0.0
    %196 = vmatpush1.msra.mxu0 %v158
    %197 = vmatprep.subr.mxu0 0.0
    %198 = vmatpush1.msra.mxu0 %v157
    %199 = vmatprep.subr.mxu0 0.0
    %200 = vmatpush1.msra.mxu0 %v156
    %201 = vmatprep.subr.mxu0 0.0
    %202 = vmatpush1.msra.mxu0 %v155
    %203 = vmatprep.subr.mxu0 0.0
    %204 = vmatpush2.msra.mxu0 0.0
    %205 = vmatprep.subr.mxu0 0.0
    %206 = vmatpush2.msra.mxu0 0.0
    %207 = vmatprep.subr.mxu0 0.0
    %208 = vmatpush2.msra.mxu0 0.0
    %209 = vmatprep.subr.mxu0 0.0
    %210 = vmatpush2.msra.mxu0 0.0
    %211 = vmatprep.subr.mxu0 0.0
    %212 = vmatpush2.msra.mxu0 0.0
    %213 = vmatprep.subr.mxu0 0.0
    %214 = vmatpush2.msra.mxu0 0.0
    %215 = vmatprep.subr.mxu0 0.0
    %216 = vmatpush2.msra.mxu0 0.0
    %217 = vmatprep.subr.mxu0 0.0
    %218 = vmatpush2.msra.mxu0 0.0
    %219 = vmatprep.subr.mxu0 0.0
    %220 = vmatpush2.msra.mxu0 0.0
    %221 = vmatprep.subr.mxu0 0.0
    %222 = vmatpush2.msra.mxu0 0.0
    %223 = vmatprep.subr.mxu0 0.0
    %224 = vmatpush2.msra.mxu0 0.0
    %225 = vmatprep.subr.mxu0 0.0
    %226 = vmatpush2.msra.mxu0 0.0
    %227 = vmatprep.subr.mxu0 0.0
    %228 = vmatpush2.msra.mxu0 0.0
    %229 = vmatprep.subr.mxu0 0.0
    %230 = vmatpush2.msra.mxu0 0.0
    %231 = vmatprep.subr.mxu0 0.0
    %232 = vmatpush2.msra.mxu0 0.0
    %233 = vmatprep.subr.mxu0 0.0
    %234 = vmatpush2.msra.mxu0 0.0
    %235 = vmatprep.mubr.f32.mxu0 0.0
    %236 = vmatmul.mubr.f32.gmra.mxu0 %v154
    %v237 = vpop.f32.mrf.mxu0
    %v238 = vadd.f32 1e-05, %v237
    %v239 = vpop.f32.mrf.mxu0
    %240 = vdwg.mxu0
    %v241 = vrsqrt.pop %v238
    %v242 = vmul.f32 %v151, %v241
    %v243 = vlaneseq
    %v244 = vshrl.u32 %v243, 7
    %v245 = vsub.s32 0, %v244
    %v246 = vrot.slane %v58, %v245
    %v247 = vmul.f32 %v242, %v246
    %v248 = vlaneseq
    %v249 = vshrl.u32 %v248, 7
    %v250 = vsub.s32 0, %v249
    %v251 = vrot.slane %v59, %v250
    %v252 = vadd.f32 %v247, %v251
    %v253 = vmul.f32 %v252, 0.5
    %v254 = vmul.f32 %v252, 0.70710677
    %v255 = verf.f32.pop %v254
    %v256 = vadd.f32 %v255, 1.0
    %v257 = vmul.f32 %v253, %v256
    %v258 = vld [vmem:[%s3] sm:$0xff]
    %v259 = vld [vmem:[%s3 + $0x8] sm:$0xff]
    %v260 = vld [vmem:[%s3 + $0x10] sm:$0xff]
    %v261 = vld [vmem:[%s3 + $0x18] sm:$0xff]
    %v262 = vld [vmem:[%s3 + $0x20] sm:$0xff]
    %v263 = vld [vmem:[%s3 + $0x28] sm:$0xff]
    %v264 = vld [vmem:[%s3 + $0x30] sm:$0xff]
    %v265 = vld [vmem:[%s3 + $0x38] sm:$0xff]
    %v266 = vld [vmem:[%s3 + $0x40] sm:$0xff]
    %v267 = vld [vmem:[%s3 + $0x48] sm:$0xff]
    %v268 = vld [vmem:[%s3 + $0x50] sm:$0xff]
    %v269 = vld [vmem:[%s3 + $0x58] sm:$0xff]
    %v270 = vld [vmem:[%s3 + $0x60] sm:$0xff]
    %v271 = vld [vmem:[%s3 + $0x68] sm:$0xff]
    %v272 = vld [vmem:[%s3 + $0x70] sm:$0xff]
    %v273 = vld [vmem:[%s3 + $0x78] sm:$0xff]
    %v274 = vlaneseq
    %v275 = vshrl.u32 %v274, 7
    %v276 = vsub.s32 0, %v275
    %v277 = vrot.slane %v60, %v276
    %278 = vmatprep.subr.mxu0 0.0
    %279 = vmatpush1.msra.mxu0 %v273
    %280 = vmatprep.subr.mxu0 0.0
    %281 = vmatpush1.msra.mxu0 %v272
    %282 = vmatprep.subr.mxu0 0.0
    %283 = vmatpush1.msra.mxu0 %v271
    %284 = vmatprep.subr.mxu0 0.0
    %285 = vmatpush1.msra.mxu0 %v270
    %286 = vmatprep.subr.mxu0 0.0
    %287 = vmatpush1.msra.mxu0 %v269
    %288 = vmatprep.subr.mxu0 0.0
    %289 = vmatpush1.msra.mxu0 %v268
    %290 = vmatprep.subr.mxu0 0.0
    %291 = vmatpush1.msra.mxu0 %v267
    %292 = vmatprep.subr.mxu0 0.0
    %293 = vmatpush1.msra.mxu0 %v266
    %294 = vmatprep.subr.mxu0 0.0
    %295 = vmatpush1.msra.mxu0 %v265
    %296 = vmatprep.subr.mxu0 0.0
    %297 = vmatpush1.msra.mxu0 %v264
    %298 = vmatprep.subr.mxu0 0.0
    %299 = vmatpush1.msra.mxu0 %v263
    %300 = vmatprep.subr.mxu0 0.0
    %301 = vmatpush1.msra.mxu0 %v262
    %302 = vmatprep.subr.mxu0 0.0
    %303 = vmatpush1.msra.mxu0 %v261
    %304 = vmatprep.subr.mxu0 0.0
    %305 = vmatpush1.msra.mxu0 %v260
    %306 = vmatprep.subr.mxu0 0.0
    %307 = vmatpush1.msra.mxu0 %v259
    %308 = vmatprep.subr.mxu0 0.0
    %309 = vmatpush1.msra.mxu0 %v258
    %310 = vmatprep.subr.mxu0 0.0
    %311 = vmatpush2.msra.mxu0 0.0
    %312 = vmatprep.subr.mxu0 0.0
    %313 = vmatpush2.msra.mxu0 0.0
    %314 = vmatprep.subr.mxu0 0.0
    %315 = vmatpush2.msra.mxu0 0.0
    %316 = vmatprep.subr.mxu0 0.0
    %317 = vmatpush2.msra.mxu0 0.0
    %318 = vmatprep.subr.mxu0 0.0
    %319 = vmatpush2.msra.mxu0 0.0
    %320 = vmatprep.subr.mxu0 0.0
    %321 = vmatpush2.msra.mxu0 0.0
    %322 = vmatprep.subr.mxu0 0.0
    %323 = vmatpush2.msra.mxu0 0.0
    %324 = vmatprep.subr.mxu0 0.0
    %325 = vmatpush2.msra.mxu0 0.0
    %326 = vmatprep.subr.mxu0 0.0
    %327 = vmatpush2.msra.mxu0 0.0
    %328 = vmatprep.subr.mxu0 0.0
    %329 = vmatpush2.msra.mxu0 0.0
    %330 = vmatprep.subr.mxu0 0.0
    %331 = vmatpush2.msra.mxu0 0.0
    %332 = vmatprep.subr.mxu0 0.0
    %333 = vmatpush2.msra.mxu0 0.0
    %334 = vmatprep.subr.mxu0 0.0
    %335 = vmatpush2.msra.mxu0 0.0
    %336 = vmatprep.subr.mxu0 0.0
    %337 = vmatpush2.msra.mxu0 0.0
    %338 = vmatprep.subr.mxu0 0.0
    %339 = vmatpush2.msra.mxu0 0.0
    %340 = vmatprep.subr.mxu0 0.0
    %341 = vmatpush2.msra.mxu0 0.0
    %342 = vmatprep.mubr.f32.mxu0 0.0
    %343 = vmatmul.mubr.f32.gmra.mxu0 %v257
    %v344 = vpop.f32.mrf.mxu0
    %v345 = vadd.f32 %v277, %v344
    %v346 = vpop.f32.mrf.mxu0
    %347 = vdwg.mxu0
    %v348 = vmul.f32 %v345, %v345
    %v349 = vld [vmem:[#allocation3] sm:$0xff]
    %v350 = vld [vmem:[#allocation3 + $0x8] sm:$0xff]
    %v351 = vld [vmem:[#allocation3 + $0x10] sm:$0xff]
    %v352 = vld [vmem:[#allocation3 + $0x18] sm:$0xff]
    %v353 = vld [vmem:[#allocation3 + $0x20] sm:$0xff]
    %v354 = vld [vmem:[#allocation3 + $0x28] sm:$0xff]
    %v355 = vld [vmem:[#allocation3 + $0x30] sm:$0xff]
    %v356 = vld [vmem:[#allocation3 + $0x38] sm:$0xff]
    %vm357 = vcmask 523264
    %v359 = vsel %vm357, %v348, 0
    %361 = vmatprep.subr.mxu0 0.0
    %362 = vmatpush1.msra.mxu0 0.0
    %363 = vmatprep.subr.mxu0 0.0
    %364 = vmatpush1.msra.mxu0 0.0
    %365 = vmatprep.subr.mxu0 0.0
    %366 = vmatpush1.msra.mxu0 0.0
    %367 = vmatprep.subr.mxu0 0.0
    %368 = vmatpush1.msra.mxu0 0.0
    %369 = vmatprep.subr.mxu0 0.0
    %370 = vmatpush1.msra.mxu0 0.0
    %371 = vmatprep.subr.mxu0 0.0
    %372 = vmatpush1.msra.mxu0 0.0
    %373 = vmatprep.subr.mxu0 0.0
    %374 = vmatpush1.msra.mxu0 0.0
    %375 = vmatprep.subr.mxu0 0.0
    %376 = vmatpush1.msra.mxu0 0.0
    %377 = vmatprep.subr.mxu0 0.0
    %378 = vmatpush1.msra.mxu0 %v356
    %379 = vmatprep.subr.mxu0 0.0
    %380 = vmatpush1.msra.mxu0 %v355
    %381 = vmatprep.subr.mxu0 0.0
    %382 = vmatpush1.msra.mxu0 %v354
    %383 = vmatprep.subr.mxu0 0.0
    %384 = vmatpush1.msra.mxu0 %v353
    %385 = vmatprep.subr.mxu0 0.0
    %386 = vmatpush1.msra.mxu0 %v352
    %387 = vmatprep.subr.mxu0 0.0
    %388 = vmatpush1.msra.mxu0 %v351
    %389 = vmatprep.subr.mxu0 0.0
    %390 = vmatpush1.msra.mxu0 %v350
    %391 = vmatprep.subr.mxu0 0.0
    %392 = vmatpush1.msra.mxu0 %v349
    %393 = vmatprep.subr.mxu0 0.0
    %394 = vmatpush2.msra.mxu0 0.0
    %395 = vmatprep.subr.mxu0 0.0
    %396 = vmatpush2.msra.mxu0 0.0
    %397 = vmatprep.subr.mxu0 0.0
    %398 = vmatpush2.msra.mxu0 0.0
    %399 = vmatprep.subr.mxu0 0.0
    %400 = vmatpush2.msra.mxu0 0.0
    %401 = vmatprep.subr.mxu0 0.0
    %402 = vmatpush2.msra.mxu0 0.0
    %403 = vmatprep.subr.mxu0 0.0
    %404 = vmatpush2.msra.mxu0 0.0
    %405 = vmatprep.subr.mxu0 0.0
    %406 = vmatpush2.msra.mxu0 0.0
    %407 = vmatprep.subr.mxu0 0.0
    %408 = vmatpush2.msra.mxu0 0.0
    %409 = vmatprep.subr.mxu0 0.0
    %410 = vmatpush2.msra.mxu0 0.0
    %411 = vmatprep.subr.mxu0 0.0
    %412 = vmatpush2.msra.mxu0 0.0
    %413 = vmatprep.subr.mxu0 0.0
    %414 = vmatpush2.msra.mxu0 0.0
    %415 = vmatprep.subr.mxu0 0.0
    %416 = vmatpush2.msra.mxu0 0.0
    %417 = vmatprep.subr.mxu0 0.0
    %418 = vmatpush2.msra.mxu0 0.0
    %419 = vmatprep.subr.mxu0 0.0
    %420 = vmatpush2.msra.mxu0 0.0
    %421 = vmatprep.subr.mxu0 0.0
    %422 = vmatpush2.msra.mxu0 0.0
    %423 = vmatprep.subr.mxu0 0.0
    %424 = vmatpush2.msra.mxu0 0.0
    %425 = vmatprep.mubr.f32.mxu0 0.0
    %426 = vmatmul.mubr.f32.gmra.mxu0 %v359
    %v427 = vpop.f32.mrf.mxu0
    %v428 = vadd.f32 1e-05, %v427
    %v429 = vpop.f32.mrf.mxu0
    %430 = vdwg.mxu0
    %v431 = vrsqrt.pop %v428
    %v432 = vmul.f32 %v345, %v431
    %v433 = vlaneseq
    %v434 = vshrl.u32 %v433, 7
    %v435 = vsub.s32 0, %v434
    %v436 = vrot.slane %v61, %v435
    %v437 = vmul.f32 %v432, %v436
    %v438 = vlaneseq
    %v439 = vshrl.u32 %v438, 7
    %v440 = vsub.s32 0, %v439
    %v441 = vrot.slane %v62, %v440
    %v442 = vadd.f32 %v437, %v441
    %v443 = vmul.f32 %v442, 0.5
    %v444 = vmul.f32 %v442, 0.70710677
    %v445 = verf.f32.pop %v444
    %v446 = vadd.f32 %v445, 1.0
    %v447 = vmul.f32 %v443, %v446
    %v448 = vld [vmem:[%s5] sm:$0xff]
    %v449 = vld [vmem:[%s5 + $0x8] sm:$0xff]
    %v450 = vld [vmem:[%s5 + $0x10] sm:$0xff]
    %v451 = vld [vmem:[%s5 + $0x18] sm:$0xff]
    %v452 = vld [vmem:[%s5 + $0x20] sm:$0xff]
    %v453 = vld [vmem:[%s5 + $0x28] sm:$0xff]
    %v454 = vld [vmem:[%s5 + $0x30] sm:$0xff]
    %v455 = vld [vmem:[%s5 + $0x38] sm:$0xff]
    %s456 = sld [smem:[#allocation2]]
    %v457 = vstv %s456
    %v459 = vsel %vm357, %v447, 0
    %461 = vmatprep.subr.mxu0 0.0
    %462 = vmatpush1.msra.mxu0 0.0
    %463 = vmatprep.subr.mxu0 0.0
    %464 = vmatpush1.msra.mxu0 0.0
    %465 = vmatprep.subr.mxu0 0.0
    %466 = vmatpush1.msra.mxu0 0.0
    %467 = vmatprep.subr.mxu0 0.0
    %468 = vmatpush1.msra.mxu0 0.0
    %469 = vmatprep.subr.mxu0 0.0
    %470 = vmatpush1.msra.mxu0 0.0
    %471 = vmatprep.subr.mxu0 0.0
    %472 = vmatpush1.msra.mxu0 0.0
    %473 = vmatprep.subr.mxu0 0.0
    %474 = vmatpush1.msra.mxu0 0.0
    %475 = vmatprep.subr.mxu0 0.0
    %476 = vmatpush1.msra.mxu0 0.0
    %477 = vmatprep.subr.mxu0 0.0
    %478 = vmatpush1.msra.mxu0 %v455
    %479 = vmatprep.subr.mxu0 0.0
    %480 = vmatpush1.msra.mxu0 %v454
    %481 = vmatprep.subr.mxu0 0.0
    %482 = vmatpush1.msra.mxu0 %v453
    %483 = vmatprep.subr.mxu0 0.0
    %484 = vmatpush1.msra.mxu0 %v452
    %485 = vmatprep.subr.mxu0 0.0
    %486 = vmatpush1.msra.mxu0 %v451
    %487 = vmatprep.subr.mxu0 0.0
    %488 = vmatpush1.msra.mxu0 %v450
    %489 = vmatprep.subr.mxu0 0.0
    %490 = vmatpush1.msra.mxu0 %v449
    %491 = vmatprep.subr.mxu0 0.0
    %492 = vmatpush1.msra.mxu0 %v448
    %493 = vmatprep.subr.mxu0 0.0
    %494 = vmatpush2.msra.mxu0 0.0
    %495 = vmatprep.subr.mxu0 0.0
    %496 = vmatpush2.msra.mxu0 0.0
    %497 = vmatprep.subr.mxu0 0.0
    %498 = vmatpush2.msra.mxu0 0.0
    %499 = vmatprep.subr.mxu0 0.0
    %500 = vmatpush2.msra.mxu0 0.0
    %501 = vmatprep.subr.mxu0 0.0
    %502 = vmatpush2.msra.mxu0 0.0
    %503 = vmatprep.subr.mxu0 0.0
    %504 = vmatpush2.msra.mxu0 0.0
    %505 = vmatprep.subr.mxu0 0.0
    %506 = vmatpush2.msra.mxu0 0.0
    %507 = vmatprep.subr.mxu0 0.0
    %508 = vmatpush2.msra.mxu0 0.0
    %509 = vmatprep.subr.mxu0 0.0
    %510 = vmatpush2.msra.mxu0 0.0
    %511 = vmatprep.subr.mxu0 0.0
    %512 = vmatpush2.msra.mxu0 0.0
    %513 = vmatprep.subr.mxu0 0.0
    %514 = vmatpush2.msra.mxu0 0.0
    %515 = vmatprep.subr.mxu0 0.0
    %516 = vmatpush2.msra.mxu0 0.0
    %517 = vmatprep.subr.mxu0 0.0
    %518 = vmatpush2.msra.mxu0 0.0
    %519 = vmatprep.subr.mxu0 0.0
    %520 = vmatpush2.msra.mxu0 0.0
    %521 = vmatprep.subr.mxu0 0.0
    %522 = vmatpush2.msra.mxu0 0.0
    %523 = vmatprep.subr.mxu0 0.0
    %524 = vmatpush2.msra.mxu0 0.0
    %525 = vmatprep.mubr.f32.mxu0 0.0
    %526 = vmatmul.mubr.f32.gmra.mxu0 %v459
    %v527 = vpop.f32.mrf.mxu0
    %v528 = vadd.f32 %v457, %v527
    %v529 = vpop.f32.mrf.mxu0
    %530 = vdwg.mxu0
    %vm531 = vcmask 64512
    %532 = vst.msk [vmem:[#allocation8] sm:$0xff] %vm531, %v528
    // Predicated region
    $region42: #{tpu_custom_call.1} parent=1 // pred_check
      _
    $region43: #{tpu_custom_call.1} parent=1 // pred_check_branch
      %534 = sbr.rel (0) target = $region45
    $region44: #{tpu_custom_call.1} parent=1 // pred_region
      %s536 = ssub.s32 128, 128
      %537 = vsyncadd [#allocation5], %s536
      %s539 = sshll.u32 [#allocation8], 4
      %s540 = int_to_ptr.vmem [resolvable:$true] %s539
      %542 = dma.vmem_to_hbm [thread:$0]  %s540, 128, %s8, [#allocation5]
    $region45: #{tpu_custom_call.1} parent=1 // pred_fallthru
      _
    // Predicated region
    $region46: #{tpu_custom_call.1} parent=1 // pred_check
      _
    $region47: #{tpu_custom_call.1} parent=1 // pred_check_branch
      %544 = sbr.rel (0) target = $region49
    $region48: #{tpu_custom_call.1} parent=1 // pred_region
      %545 = dma.done [#allocation5], 128
    $region49: #{tpu_custom_call.1} parent=1 // pred_fallthru
      _
    %546 = vsyncpa [#allocation4], 1
    %547 = vsyncpa [#allocation7], 1
    %548 = vsyncpa [#allocation5], 1

</llo_original>
